<compile_context>
chip_gen: v7x
topology: tpu7x:2x2x1
jax: 0.10.0
libtpu: 0.0.40
codegen_flags: <defaults>
</compile_context>

<pallas_src>
import functools

import jax
import jax.numpy as jnp
from jax.experimental import pallas as pl
from jax.experimental.pallas import tpu as pltpu

_LANE_CANDIDATES = (4096, 2048, 1024, 512, 256, 128)
_TARGET_BLOCK_BYTES = 4 << 20      # ~4 MiB per input block (x4 with dbl-buffered in+out)
_VMEM_LIMIT_BYTES = 32 << 20       # safe on v5e / v6e / v7x; ample for the 16 MiB footprint
_SMALL_FALLBACK_BYTES = 256 << 10  # below this, plain XLA fusion beats a kernel launch


def _round_up(a, b):
    return ((a + b - 1) // b) * b


def _h_swish_jnp(x):
    # reference / fallback path
    return x * (jnp.clip(x + 3.0, 0.0, 6.0) / 6.0)


def _h_swish_kernel(x_ref, o_ref, *, compute_dtype):
    x = x_ref[...].astype(compute_dtype)
    # h_sigmoid(x) = relu6(x + 3) / 6 ; h_swish(x) = x * h_sigmoid(x)
    y = x * (jnp.clip(x + 3.0, 0.0, 6.0) * (1.0 / 6.0))
    o_ref[...] = y.astype(o_ref.dtype)


def h_swish(x, *, force_pallas=False):
    """Elementwise x * relu6(x+3)/6. Same shape/dtype as input."""
    dtype = x.dtype
    total = x.size
    itemsize = jnp.dtype(dtype).itemsize

    if total == 0:
        return x

    if not jnp.issubdtype(dtype, jnp.floating):
        # Integer dtypes would truncate on the cast back; use the XLA path.
        return _h_swish_jnp(x)

    if not force_pallas and total * itemsize < _SMALL_FALLBACK_BYTES:
        # Tiny tensors: kernel launch + layout plumbing dominates.
        return _h_swish_jnp(x)

    # Largest lane width (multiple of 128) that divides the element count.
    cols = next((c for c in _LANE_CANDIDATES if total % c == 0), None)
    if cols is None:
        # Not a multiple of 128: padding would add two extra full-tensor HBM
        # passes on a memory-bound op, so plain XLA is at least as fast.
        return _h_swish_jnp(x)

    rows = total // cols
    sub = {4: 8, 2: 16, 1: 32}.get(itemsize, 8)   # sublane multiple per dtype width

    # Row tile sized for ~_TARGET_BLOCK_BYTES per input block (multiple of `sub`).
    max_tile_rows = max(sub, (_TARGET_BLOCK_BYTES // (cols * itemsize)) // sub * sub)
    if rows <= max_tile_rows:
        if rows >= 2 * sub:
            # Split into >= 2 blocks so both v7x TensorCores get work.
            tile_rows = _round_up(pl.cdiv(rows, 2), sub)
        else:
            # Single block equal to the full array (no alignment requirement).
            tile_rows = rows
    else:
        tile_rows = max_tile_rows
    num_blocks = pl.cdiv(rows, tile_rows)   # ragged last block is masked by Pallas

    # bf16 math stays bf16 (bf16-capable VPU on v6e/v7x, widened by Mosaic on
    # v5e); f16 and anything else computes in f32.
    compute_dtype = dtype if dtype in (jnp.float32, jnp.bfloat16) else jnp.float32

    x2d = x.reshape(rows, cols)   # contiguous reshape: no copy

    out2d = pl.pallas_call(
        functools.partial(_h_swish_kernel, compute_dtype=compute_dtype),
        out_shape=jax.ShapeDtypeStruct((rows, cols), dtype),
        grid_spec=pltpu.PrefetchScalarGridSpec(
            num_scalar_prefetch=0,
            grid=(num_blocks,),
            in_specs=[pl.BlockSpec((tile_rows, cols), lambda i: (i, 0))],
            out_specs=pl.BlockSpec((tile_rows, cols), lambda i: (i, 0)),
        ),
        compiler_params=pltpu.CompilerParams(
            dimension_semantics=("parallel",),
            vmem_limit_bytes=_VMEM_LIMIT_BYTES,
        ),
        cost_estimate=pl.CostEstimate(
            flops=5 * total,
            transcendentals=0,
            bytes_accessed=2 * total * itemsize,
        ),
    )(x2d)

    return out2d.reshape(x.shape)


if __name__ == "__main__":
    key = jax.random.PRNGKey(0)
    k0, k1, k2 = jax.random.split(key, 3)

    # Spec shape (N, C, H, W) = (2, 4, 16, 16); force the Pallas path so the
    # kernel itself is exercised even though this input is tiny.
    x = jax.random.normal(k0, (2, 4, 16, 16), dtype=jnp.float32) * 4.0
    y = h_swish(x, force_pallas=True)
    jax.block_until_ready(y)
    assert y.shape == x.shape and y.dtype == x.dtype
    assert jnp.allclose(y, _h_swish_jnp(x), atol=1e-6, rtol=1e-6)

    # Larger activation: multi-block grid with a ragged last block.
    x2 = jax.random.normal(k1, (2, 32, 56, 56), dtype=jnp.float32) * 4.0
    y2 = h_swish(x2)
    jax.block_until_ready(y2)
    assert jnp.allclose(y2, _h_swish_jnp(x2), atol=1e-6, rtol=1e-6)

    # bf16 path (native bf16 compute inside the kernel).
    x3 = (jax.random.normal(k2, (2, 4, 16, 16), dtype=jnp.float32) * 4.0).astype(jnp.bfloat16)
    y3 = h_swish(x3, force_pallas=True)
    jax.block_until_ready(y3)
    assert y3.dtype == jnp.bfloat16
    assert jnp.allclose(y3.astype(jnp.float32),
                        _h_swish_jnp(x3.astype(jnp.float32)), atol=5e-2, rtol=5e-2)

    # Element count not divisible by 128: clean XLA fallback, no padding passes.
    x4 = jax.random.normal(k0, (3, 5, 7), dtype=jnp.float32) * 4.0
    y4 = h_swish(x4)
    jax.block_until_ready(y4)
    assert jnp.allclose(y4, _h_swish_jnp(x4), atol=1e-6, rtol=1e-6)

    print("KERNEL_OK")
</pallas_src>

<mosaic_0001>
module attributes {stable_mosaic.version = 11 : i64} {
  func.func @_h_swish_kernel(%arg0: i32, %arg1: memref<1x2048xf32, #tpu.memory_space<vmem>>, %arg2: memref<1x2048xf32, #tpu.memory_space<vmem>>) attributes {dimension_semantics = [#tpu.dimension_semantics<parallel>], iteration_bounds = array<i64: 1>, scalar_prefetch = 0 : i64, scratch_operands = 0 : i64, tpu.core_type = #tpu.core_type<tc>, window_params = [{transform_indices = @transform_0, window_bounds = array<i64: 1, 2048>}, {transform_indices = @transform_1, window_bounds = array<i64: 1, 2048>}]} {
    %c0 = arith.constant 0 : index
    %c0_0 = arith.constant 0 : index
    %0 = vector.load %arg1[%c0, %c0_0] : memref<1x2048xf32, #tpu.memory_space<vmem>>, vector<1x2048xf32>
    %cst = arith.constant 3.000000e+00 : f32
    %1 = vector.broadcast %cst : f32 to vector<1x2048xf32>
    %2 = arith.addf %0, %1 : vector<1x2048xf32>
    %cst_1 = arith.constant 0.000000e+00 : f32
    %cst_2 = arith.constant 6.000000e+00 : f32
    %3 = vector.broadcast %cst_1 : f32 to vector<1x2048xf32>
    %4 = arith.maximumf %3, %2 : vector<1x2048xf32>
    %5 = vector.broadcast %cst_2 : f32 to vector<1x2048xf32>
    %6 = arith.minimumf %5, %4 : vector<1x2048xf32>
    %cst_3 = arith.constant 0.166666672 : f32
    %7 = vector.broadcast %cst_3 : f32 to vector<1x2048xf32>
    %8 = arith.mulf %6, %7 : vector<1x2048xf32>
    %9 = arith.mulf %0, %8 : vector<1x2048xf32>
    %c0_4 = arith.constant 0 : index
    %c0_5 = arith.constant 0 : index
    %10 = vector.load %arg2[%c0_4, %c0_5] : memref<1x2048xf32, #tpu.memory_space<vmem>>, vector<1x2048xf32>
    tpu.vector_store %arg2[%c0_4, %c0_5], %9 {strides = array<i32>} : memref<1x2048xf32, #tpu.memory_space<vmem>>, vector<1x2048xf32>,
    return
  }
  func.func @transform_0(%arg0: i32) -> (i32, i32) {
    %c0_i32 = arith.constant 0 : i32
    %c0_i32_0 = arith.constant 0 : i32
    return %arg0, %c0_i32 : i32, i32
  }
  func.func @transform_1(%arg0: i32) -> (i32, i32) {
    %c0_i32 = arith.constant 0 : i32
    %c0_i32_0 = arith.constant 0 : i32
    return %arg0, %c0_i32 : i32, i32
  }
}

</mosaic_0001>

<llo_original>
// kernel: tpu_custom_call.1
$region0: #{tpu_custom_call.1}
  #allocation0 [shape = 'u32[]', space=smem, size = 0x4, offset = 0x4, fixed_abs, tag = 'smem constant byte address 0x4 - core index']
  #allocation1 [shape = 'u32[144,128]{1,0:T(1,128)}', space=vmem, size = 0x12000, scoped, tag = 'internal scratch']
  %s0 = inlined_call_operand.hbm [shape: f32[1,2048], index: 0, kind: input, shape index: {}]
  %s1 = inlined_call_operand.hbm [shape: f32[1,2048], index: 1, kind: output, shape index: {}]
  %s2 = sld [smem:[#allocation0]]
  $region18: #{tpu_custom_call.1} parent=0
    _
  %s4 = ssub.s32 1, %s2
  %s5 = scalar_select 0, %s4, %s2
  $region1: #{tpu_custom_call.1} parent=0
    #allocation2 [shape = 'u8[8192]{0}', space=vmem, size = 0x2000, scoped, tag = 'input window, operand 0, single buffered']
    #allocation3 [shape = 's32[1]{0}', space=sflag, size = 0x4, scoped, tag = 'scoped memory for tpu_custom_call.1']
    #allocation4 [shape = 's32[1]{0}', space=sflag, size = 0x4, scoped, tag = 'scoped memory for tpu_custom_call.1']
    #allocation5 [shape = 'u8[8192]{0}', space=vmem, size = 0x2000, scoped, tag = 'output window, operand 0, single buffered']
    %6 = vsyncpa [#allocation3], 0
    %7 = vsyncpa [#allocation4], 0
    // Predicated region
    $region2: #{tpu_custom_call.1} parent=1 // pred_check
      _
    $region3: #{tpu_custom_call.1} parent=1 // pred_check_branch
      %9 = sbr.rel (0) target = $region5
    $region4: #{tpu_custom_call.1} parent=1 // pred_region
      %s11 = ssub.s32 256, 256
      %12 = vsyncadd [#allocation3], %s11
      %s14 = sshll.u32 [#allocation2], 4
      %s15 = int_to_ptr.vmem [resolvable:$true] %s14
      %17 = dma.hbm_to_vmem [thread:$0]  %s0, 256, %s15, [#allocation3]
    $region5: #{tpu_custom_call.1} parent=1 // pred_fallthru
      _
    // Predicated region
    $region6: #{tpu_custom_call.1} parent=1 // pred_check
      _
    $region7: #{tpu_custom_call.1} parent=1 // pred_check_branch
      %19 = sbr.rel (0) target = $region9
    $region8: #{tpu_custom_call.1} parent=1 // pred_region
      %20 = dma.done [#allocation3], 256
    $region9: #{tpu_custom_call.1} parent=1 // pred_fallthru
      _
    %v21 = vld [vmem:[#allocation2] sm:$0xff]
    %v22 = vld [vmem:[#allocation2 + $0x8] sm:$0xff]
    %v23 = vadd.f32 %v21, 3.0
    %v24 = vadd.f32 %v22, 3.0
    %v25 = vmax.f32 %v23, 0.0
    %v26 = vmax.f32 %v24, 0.0
    %v27 = vmin.f32 %v25, 6.0
    %v28 = vmin.f32 %v26, 6.0
    %v29 = vmul.f32 %v27, 0.16666667
    %v30 = vmul.f32 %v28, 0.16666667
    %v31 = vmul.f32 %v21, %v29
    %v32 = vmul.f32 %v22, %v30
    %33 = vst [vmem:[#allocation5] sm:$0xff] %v31
    %34 = vst [vmem:[#allocation5 + $0x8] sm:$0xff] %v32
    // Predicated region
    $region10: #{tpu_custom_call.1} parent=1 // pred_check
      _
    $region11: #{tpu_custom_call.1} parent=1 // pred_check_branch
      %36 = sbr.rel (0) target = $region13
    $region12: #{tpu_custom_call.1} parent=1 // pred_region
      %s38 = ssub.s32 256, 256
      %39 = vsyncadd [#allocation4], %s38
      %s41 = sshll.u32 [#allocation5], 4
      %s42 = int_to_ptr.vmem [resolvable:$true] %s41
      %44 = dma.vmem_to_hbm [thread:$0]  %s42, 256, %s1, [#allocation4]
    $region13: #{tpu_custom_call.1} parent=1 // pred_fallthru
      _
    // Predicated region
    $region14: #{tpu_custom_call.1} parent=1 // pred_check
      _
    $region15: #{tpu_custom_call.1} parent=1 // pred_check_branch
      %46 = sbr.rel (0) target = $region17
    $region16: #{tpu_custom_call.1} parent=1 // pred_region
      %47 = dma.done [#allocation4], 256
    $region17: #{tpu_custom_call.1} parent=1 // pred_fallthru
      _
    %48 = vsyncpa [#allocation3], 1
    %49 = vsyncpa [#allocation4], 1

</llo_original>
